<compile_context>
chip_gen: v6e
topology: v6e:2x2x1
jax: 0.10.0
libtpu: 0.0.40
codegen_flags: <defaults>
</compile_context>

<pallas_src>
import functools

import jax
import jax.numpy as jnp
from jax.experimental import pallas as pl
from jax.experimental.pallas import tpu as pltpu


def _circconv_kernel(x_ref, w_ref, b_ref, o_ref, cols_ref, *,
                     n_adj, n_pts, n_batch, n_in):
    """Fused circular-conv1d.

    x_ref   : (C_in, B*N)      channel-major activations (batches along lanes)
    w_ref   : (C_out, K*C_in)  fused tap-major weight: w2[o, k*C_in+i] = w[o,i,k]
    b_ref   : (C_out, 1)       bias (f32)
    o_ref   : (C_out, B*N)     lane-dense output
    cols_ref: (K*C_in, B*N)    VMEM scratch holding the im2col slab
    """
    ksize = 2 * n_adj + 1
    # Build the im2col slab:
    #   cols[k*C_in + i, b*N + j] = x[b, i, (j + k - n_adj) mod N].
    # Every (tap, batch) window is at most two contiguous STATIC slice copies
    # of the input (the circular wrap), done entirely within VMEM; each slab
    # element is written exactly once, so no zero-init is required.
    for k in range(ksize):
        d = (k - n_adj) % n_pts                    # left-rotate amount in [0, N)
        rows = slice(k * n_in, (k + 1) * n_in)
        for b in range(n_batch):
            base = b * n_pts                       # column base for batch b
            if d == 0:
                cols_ref[rows, base:base + n_pts] = x_ref[:, base:base + n_pts]
            else:
                head = n_pts - d
                cols_ref[rows, base:base + head] = x_ref[:, base + d:base + n_pts]
                cols_ref[rows, base + head:base + n_pts] = x_ref[:, base:base + d]

    # One MXU contraction over all taps and channels (instead of K tiny
    # matmuls), f32 accumulation, bias folded into the epilogue.
    acc = jnp.dot(w_ref[...], cols_ref[...], preferred_element_type=jnp.float32)
    o_ref[...] = (acc + b_ref[...]).astype(o_ref.dtype)


def circ_conv(x, weight, bias, n_adj=4):
    """CircConv forward.

    x      : (B, C_in, N)
    weight : (C_out, C_in, 2*n_adj+1)
    bias   : (C_out,)
    returns: (B, C_out, N)
    """
    B, C_in, N = x.shape
    C_out, _, K = weight.shape
    assert K == 2 * n_adj + 1
    assert n_adj < N, "circular pad width must be smaller than N"

    dtype = x.dtype
    # Channel-major, batch-flattened activations: x2[i, b*N + j] = x[b, i, j].
    x2 = jnp.transpose(x, (1, 0, 2)).reshape(C_in, B * N)
    # Fused tap-major weight: w2[o, k*C_in + i] = weight[o, i, k].
    w2 = jnp.transpose(weight, (0, 2, 1)).reshape(C_out, K * C_in).astype(dtype)
    b2 = bias.reshape(C_out, 1).astype(jnp.float32)

    kernel = functools.partial(_circconv_kernel, n_adj=n_adj, n_pts=N,
                               n_batch=B, n_in=C_in)

    itemsize = jnp.dtype(dtype).itemsize
    cost = pl.CostEstimate(
        flops=2 * B * C_out * C_in * K * N,
        transcendentals=0,
        bytes_accessed=(x2.size + w2.size + C_out * B * N) * itemsize + b2.size * 4)

    # TODO(synk): when N scales up, add a "parallel" N-tile grid axis so v7x's
    # 2 TensorCores are both used, and re-derive tile sizes against v7x's
    # 64 MiB VMEM; at N=16 a size-1 grid avoids pure per-step overhead.
    out2 = pl.pallas_call(
        kernel,
        out_shape=jax.ShapeDtypeStruct((C_out, B * N), dtype),
        grid_spec=pltpu.PrefetchScalarGridSpec(
            num_scalar_prefetch=0,
            grid=(1,),
            in_specs=[
                pl.BlockSpec((C_in, B * N), lambda i: (0, 0)),
                pl.BlockSpec((C_out, K * C_in), lambda i: (0, 0)),
                pl.BlockSpec((C_out, 1), lambda i: (0, 0)),
            ],
            out_specs=pl.BlockSpec((C_out, B * N), lambda i: (0, 0)),
            scratch_shapes=[pltpu.VMEM((K * C_in, B * N), dtype)],
        ),
        compiler_params=pltpu.CompilerParams(
            dimension_semantics=("arbitrary",)),
        cost_estimate=cost,
    )(x2, w2, b2)

    # (C_out, B*N) -> (B, C_out, N)
    return jnp.transpose(out2.reshape(C_out, B, N), (1, 0, 2))


def circ_conv_reference(x, weight, bias, n_adj=4):
    """Pure-JAX reference (lax conv) for correctness check."""
    x_pad = jnp.concatenate([x[..., -n_adj:], x, x[..., :n_adj]], axis=2)
    out = jax.lax.conv_general_dilated(
        x_pad, weight,
        window_strides=(1,), padding="VALID",
        dimension_numbers=("NCH", "OIH", "NCH"))
    return out + bias[None, :, None]


if __name__ == "__main__":
    # Module config: state_dim=4, out_state_dim=4 (default), n_adj=4 -> K=9.
    B, C_in, C_out, N, n_adj = 2, 4, 4, 16, 4
    K = 2 * n_adj + 1

    key = jax.random.PRNGKey(0)
    kx, kw, kb = jax.random.split(key, 3)
    x = jax.random.normal(kx, (B, C_in, N), dtype=jnp.float32)
    # Deterministic synthetic Conv1d parameters (shapes per nn.Conv1d(state_dim, out, K)).
    weight = jax.random.normal(kw, (C_out, C_in, K), dtype=jnp.float32) * 0.1
    bias = jax.random.normal(kb, (C_out,), dtype=jnp.float32) * 0.1

    out = circ_conv(x, weight, bias, n_adj=n_adj)
    out = jax.block_until_ready(out)

    ref = circ_conv_reference(x, weight, bias, n_adj=n_adj)
    assert out.shape == (B, C_out, N)
    assert jnp.allclose(out, ref, atol=1e-4, rtol=1e-4)

    print("KERNEL_OK")
</pallas_src>

<mosaic_0001>
module attributes {stable_mosaic.version = 11 : i64} {
  func.func @_circconv_kernel(%arg0: i32, %arg1: memref<4x32xf32, #tpu.memory_space<vmem>>, %arg2: memref<4x36xf32, #tpu.memory_space<vmem>>, %arg3: memref<4x1xf32, #tpu.memory_space<vmem>>, %arg4: memref<4x32xf32, #tpu.memory_space<vmem>>, %arg5: memref<36x32xf32, #tpu.memory_space<vmem>>) attributes {dimension_semantics = [#tpu.dimension_semantics<arbitrary>], iteration_bounds = array<i64: 1>, scalar_prefetch = 0 : i64, scratch_operands = 1 : i64, tpu.core_type = #tpu.core_type<tc>, window_params = [{pipeline_mode = #tpu.pipeline_mode<synchronous>, transform_indices = @transform_0, window_bounds = array<i64: 4, 32>}, {pipeline_mode = #tpu.pipeline_mode<synchronous>, transform_indices = @transform_1, window_bounds = array<i64: 4, 36>}, {pipeline_mode = #tpu.pipeline_mode<synchronous>, transform_indices = @transform_2, window_bounds = array<i64: 4, 1>}, {pipeline_mode = #tpu.pipeline_mode<synchronous>, transform_indices = @transform_3, window_bounds = array<i64: 4, 32>}]} {
    %c0 = arith.constant 0 : index
    %c12 = arith.constant 12 : index
    %0 = vector.load %arg1[%c0, %c12] : memref<4x32xf32, #tpu.memory_space<vmem>>, vector<4x4xf32>
    %c0_0 = arith.constant 0 : index
    %c0_1 = arith.constant 0 : index
    %1 = vector.load %arg5[%c0_0, %c0_1] : memref<36x32xf32, #tpu.memory_space<vmem>>, vector<4x4xf32>
    tpu.vector_store %arg5[%c0_0, %c0_1], %0 {strides = array<i32>} : memref<36x32xf32, #tpu.memory_space<vmem>>, vector<4x4xf32>,
    %c0_2 = arith.constant 0 : index
    %c0_3 = arith.constant 0 : index
    %2 = vector.load %arg1[%c0_2, %c0_3] : memref<4x32xf32, #tpu.memory_space<vmem>>, vector<4x12xf32>
    %c0_4 = arith.constant 0 : index
    %c4 = arith.constant 4 : index
    %3 = vector.load %arg5[%c0_4, %c4] : memref<36x32xf32, #tpu.memory_space<vmem>>, vector<4x12xf32>
    tpu.vector_store %arg5[%c0_4, %c4], %2 {strides = array<i32>} : memref<36x32xf32, #tpu.memory_space<vmem>>, vector<4x12xf32>,
    %c0_5 = arith.constant 0 : index
    %c28 = arith.constant 28 : index
    %4 = vector.load %arg1[%c0_5, %c28] : memref<4x32xf32, #tpu.memory_space<vmem>>, vector<4x4xf32>
    %c0_6 = arith.constant 0 : index
    %c16 = arith.constant 16 : index
    %5 = vector.load %arg5[%c0_6, %c16] : memref<36x32xf32, #tpu.memory_space<vmem>>, vector<4x4xf32>
    tpu.vector_store %arg5[%c0_6, %c16], %4 {strides = array<i32>} : memref<36x32xf32, #tpu.memory_space<vmem>>, vector<4x4xf32>,
    %c0_7 = arith.constant 0 : index
    %c16_8 = arith.constant 16 : index
    %6 = vector.load %arg1[%c0_7, %c16_8] : memref<4x32xf32, #tpu.memory_space<vmem>>, vector<4x12xf32>
    %c0_9 = arith.constant 0 : index
    %c20 = arith.constant 20 : index
    %7 = vector.load %arg5[%c0_9, %c20] : memref<36x32xf32, #tpu.memory_space<vmem>>, vector<4x12xf32>
    tpu.vector_store %arg5[%c0_9, %c20], %6 {strides = array<i32>} : memref<36x32xf32, #tpu.memory_space<vmem>>, vector<4x12xf32>,
    %c0_10 = arith.constant 0 : index
    %c13 = arith.constant 13 : index
    %8 = vector.load %arg1[%c0_10, %c13] : memref<4x32xf32, #tpu.memory_space<vmem>>, vector<4x3xf32>
    %c4_11 = arith.constant 4 : index
    %c0_12 = arith.constant 0 : index
    %9 = vector.load %arg5[%c4_11, %c0_12] : memref<36x32xf32, #tpu.memory_space<vmem>>, vector<4x3xf32>
    tpu.vector_store %arg5[%c4_11, %c0_12], %8 {strides = array<i32>} : memref<36x32xf32, #tpu.memory_space<vmem>>, vector<4x3xf32>,
    %c0_13 = arith.constant 0 : index
    %c0_14 = arith.constant 0 : index
    %10 = vector.load %arg1[%c0_13, %c0_14] : memref<4x32xf32, #tpu.memory_space<vmem>>, vector<4x13xf32>
    %c4_15 = arith.constant 4 : index
    %c3 = arith.constant 3 : index
    %11 = vector.load %arg5[%c4_15, %c3] : memref<36x32xf32, #tpu.memory_space<vmem>>, vector<4x13xf32>
    tpu.vector_store %arg5[%c4_15, %c3], %10 {strides = array<i32>} : memref<36x32xf32, #tpu.memory_space<vmem>>, vector<4x13xf32>,
    %c0_16 = arith.constant 0 : index
    %c29 = arith.constant 29 : index
    %12 = vector.load %arg1[%c0_16, %c29] : memref<4x32xf32, #tpu.memory_space<vmem>>, vector<4x3xf32>
    %c4_17 = arith.constant 4 : index
    %c16_18 = arith.constant 16 : index
    %13 = vector.load %arg5[%c4_17, %c16_18] : memref<36x32xf32, #tpu.memory_space<vmem>>, vector<4x3xf32>
    tpu.vector_store %arg5[%c4_17, %c16_18], %12 {strides = array<i32>} : memref<36x32xf32, #tpu.memory_space<vmem>>, vector<4x3xf32>,
    %c0_19 = arith.constant 0 : index
    %c16_20 = arith.constant 16 : index
    %14 = vector.load %arg1[%c0_19, %c16_20] : memref<4x32xf32, #tpu.memory_space<vmem>>, vector<4x13xf32>
    %c4_21 = arith.constant 4 : index
    %c19 = arith.constant 19 : index
    %15 = vector.load %arg5[%c4_21, %c19] : memref<36x32xf32, #tpu.memory_space<vmem>>, vector<4x13xf32>
    tpu.vector_store %arg5[%c4_21, %c19], %14 {strides = array<i32>} : memref<36x32xf32, #tpu.memory_space<vmem>>, vector<4x13xf32>,
    %c0_22 = arith.constant 0 : index
    %c14 = arith.constant 14 : index
    %16 = vector.load %arg1[%c0_22, %c14] : memref<4x32xf32, #tpu.memory_space<vmem>>, vector<4x2xf32>
    %c8 = arith.constant 8 : index
    %c0_23 = arith.constant 0 : index
    %17 = vector.load %arg5[%c8, %c0_23] : memref<36x32xf32, #tpu.memory_space<vmem>>, vector<4x2xf32>
    tpu.vector_store %arg5[%c8, %c0_23], %16 {strides = array<i32>} : memref<36x32xf32, #tpu.memory_space<vmem>>, vector<4x2xf32>,
    %c0_24 = arith.constant 0 : index
    %c0_25 = arith.constant 0 : index
    %18 = vector.load %arg1[%c0_24, %c0_25] : memref<4x32xf32, #tpu.memory_space<vmem>>, vector<4x14xf32>
    %c8_26 = arith.constant 8 : index
    %c2 = arith.constant 2 : index
    %19 = vector.load %arg5[%c8_26, %c2] : memref<36x32xf32, #tpu.memory_space<vmem>>, vector<4x14xf32>
    tpu.vector_store %arg5[%c8_26, %c2], %18 {strides = array<i32>} : memref<36x32xf32, #tpu.memory_space<vmem>>, vector<4x14xf32>,
    %c0_27 = arith.constant 0 : index
    %c30 = arith.constant 30 : index
    %20 = vector.load %arg1[%c0_27, %c30] : memref<4x32xf32, #tpu.memory_space<vmem>>, vector<4x2xf32>
    %c8_28 = arith.constant 8 : index
    %c16_29 = arith.constant 16 : index
    %21 = vector.load %arg5[%c8_28, %c16_29] : memref<36x32xf32, #tpu.memory_space<vmem>>, vector<4x2xf32>
    tpu.vector_store %arg5[%c8_28, %c16_29], %20 {strides = array<i32>} : memref<36x32xf32, #tpu.memory_space<vmem>>, vector<4x2xf32>,
    %c0_30 = arith.constant 0 : index
    %c16_31 = arith.constant 16 : index
    %22 = vector.load %arg1[%c0_30, %c16_31] : memref<4x32xf32, #tpu.memory_space<vmem>>, vector<4x14xf32>
    %c8_32 = arith.constant 8 : index
    %c18 = arith.constant 18 : index
    %23 = vector.load %arg5[%c8_32, %c18] : memref<36x32xf32, #tpu.memory_space<vmem>>, vector<4x14xf32>
    tpu.vector_store %arg5[%c8_32, %c18], %22 {strides = array<i32>} : memref<36x32xf32, #tpu.memory_space<vmem>>, vector<4x14xf32>,
    %c0_33 = arith.constant 0 : index
    %c15 = arith.constant 15 : index
    %24 = vector.load %arg1[%c0_33, %c15] : memref<4x32xf32, #tpu.memory_space<vmem>>, vector<4x1xf32>
    %c12_34 = arith.constant 12 : index
    %c0_35 = arith.constant 0 : index
    %25 = vector.load %arg5[%c12_34, %c0_35] : memref<36x32xf32, #tpu.memory_space<vmem>>, vector<4x1xf32>
    tpu.vector_store %arg5[%c12_34, %c0_35], %24 {strides = array<i32>} : memref<36x32xf32, #tpu.memory_space<vmem>>, vector<4x1xf32>,
    %c0_36 = arith.constant 0 : index
    %c0_37 = arith.constant 0 : index
    %26 = vector.load %arg1[%c0_36, %c0_37] : memref<4x32xf32, #tpu.memory_space<vmem>>, vector<4x15xf32>
    %c12_38 = arith.constant 12 : index
    %c1 = arith.constant 1 : index
    %27 = vector.load %arg5[%c12_38, %c1] : memref<36x32xf32, #tpu.memory_space<vmem>>, vector<4x15xf32>
    tpu.vector_store %arg5[%c12_38, %c1], %26 {strides = array<i32>} : memref<36x32xf32, #tpu.memory_space<vmem>>, vector<4x15xf32>,
    %c0_39 = arith.constant 0 : index
    %c31 = arith.constant 31 : index
    %28 = vector.load %arg1[%c0_39, %c31] : memref<4x32xf32, #tpu.memory_space<vmem>>, vector<4x1xf32>
    %c12_40 = arith.constant 12 : index
    %c16_41 = arith.constant 16 : index
    %29 = vector.load %arg5[%c12_40, %c16_41] : memref<36x32xf32, #tpu.memory_space<vmem>>, vector<4x1xf32>
    tpu.vector_store %arg5[%c12_40, %c16_41], %28 {strides = array<i32>} : memref<36x32xf32, #tpu.memory_space<vmem>>, vector<4x1xf32>,
    %c0_42 = arith.constant 0 : index
    %c16_43 = arith.constant 16 : index
    %30 = vector.load %arg1[%c0_42, %c16_43] : memref<4x32xf32, #tpu.memory_space<vmem>>, vector<4x15xf32>
    %c12_44 = arith.constant 12 : index
    %c17 = arith.constant 17 : index
    %31 = vector.load %arg5[%c12_44, %c17] : memref<36x32xf32, #tpu.memory_space<vmem>>, vector<4x15xf32>
    tpu.vector_store %arg5[%c12_44, %c17], %30 {strides = array<i32>} : memref<36x32xf32, #tpu.memory_space<vmem>>, vector<4x15xf32>,
    %c0_45 = arith.constant 0 : index
    %c0_46 = arith.constant 0 : index
    %32 = vector.load %arg1[%c0_45, %c0_46] : memref<4x32xf32, #tpu.memory_space<vmem>>, vector<4x16xf32>
    %c16_47 = arith.constant 16 : index
    %c0_48 = arith.constant 0 : index
    %33 = vector.load %arg5[%c16_47, %c0_48] : memref<36x32xf32, #tpu.memory_space<vmem>>, vector<4x16xf32>
    tpu.vector_store %arg5[%c16_47, %c0_48], %32 {strides = array<i32>} : memref<36x32xf32, #tpu.memory_space<vmem>>, vector<4x16xf32>,
    %c0_49 = arith.constant 0 : index
    %c16_50 = arith.constant 16 : index
    %34 = vector.load %arg1[%c0_49, %c16_50] : memref<4x32xf32, #tpu.memory_space<vmem>>, vector<4x16xf32>
    %c16_51 = arith.constant 16 : index
    %c16_52 = arith.constant 16 : index
    %35 = vector.load %arg5[%c16_51, %c16_52] : memref<36x32xf32, #tpu.memory_space<vmem>>, vector<4x16xf32>
    tpu.vector_store %arg5[%c16_51, %c16_52], %34 {strides = array<i32>} : memref<36x32xf32, #tpu.memory_space<vmem>>, vector<4x16xf32>,
    %c0_53 = arith.constant 0 : index
    %c1_54 = arith.constant 1 : index
    %36 = vector.load %arg1[%c0_53, %c1_54] : memref<4x32xf32, #tpu.memory_space<vmem>>, vector<4x15xf32>
    %c20_55 = arith.constant 20 : index
    %c0_56 = arith.constant 0 : index
    %37 = vector.load %arg5[%c20_55, %c0_56] : memref<36x32xf32, #tpu.memory_space<vmem>>, vector<4x15xf32>
    tpu.vector_store %arg5[%c20_55, %c0_56], %36 {strides = array<i32>} : memref<36x32xf32, #tpu.memory_space<vmem>>, vector<4x15xf32>,
    %c0_57 = arith.constant 0 : index
    %c0_58 = arith.constant 0 : index
    %38 = vector.load %arg1[%c0_57, %c0_58] : memref<4x32xf32, #tpu.memory_space<vmem>>, vector<4x1xf32>
    %c20_59 = arith.constant 20 : index
    %c15_60 = arith.constant 15 : index
    %39 = vector.load %arg5[%c20_59, %c15_60] : memref<36x32xf32, #tpu.memory_space<vmem>>, vector<4x1xf32>
    tpu.vector_store %arg5[%c20_59, %c15_60], %38 {strides = array<i32>} : memref<36x32xf32, #tpu.memory_space<vmem>>, vector<4x1xf32>,
    %c0_61 = arith.constant 0 : index
    %c17_62 = arith.constant 17 : index
    %40 = vector.load %arg1[%c0_61, %c17_62] : memref<4x32xf32, #tpu.memory_space<vmem>>, vector<4x15xf32>
    %c20_63 = arith.constant 20 : index
    %c16_64 = arith.constant 16 : index
    %41 = vector.load %arg5[%c20_63, %c16_64] : memref<36x32xf32, #tpu.memory_space<vmem>>, vector<4x15xf32>
    tpu.vector_store %arg5[%c20_63, %c16_64], %40 {strides = array<i32>} : memref<36x32xf32, #tpu.memory_space<vmem>>, vector<4x15xf32>,
    %c0_65 = arith.constant 0 : index
    %c16_66 = arith.constant 16 : index
    %42 = vector.load %arg1[%c0_65, %c16_66] : memref<4x32xf32, #tpu.memory_space<vmem>>, vector<4x1xf32>
    %c20_67 = arith.constant 20 : index
    %c31_68 = arith.constant 31 : index
    %43 = vector.load %arg5[%c20_67, %c31_68] : memref<36x32xf32, #tpu.memory_space<vmem>>, vector<4x1xf32>
    tpu.vector_store %arg5[%c20_67, %c31_68], %42 {strides = array<i32>} : memref<36x32xf32, #tpu.memory_space<vmem>>, vector<4x1xf32>,
    %c0_69 = arith.constant 0 : index
    %c2_70 = arith.constant 2 : index
    %44 = vector.load %arg1[%c0_69, %c2_70] : memref<4x32xf32, #tpu.memory_space<vmem>>, vector<4x14xf32>
    %c24 = arith.constant 24 : index
    %c0_71 = arith.constant 0 : index
    %45 = vector.load %arg5[%c24, %c0_71] : memref<36x32xf32, #tpu.memory_space<vmem>>, vector<4x14xf32>
    tpu.vector_store %arg5[%c24, %c0_71], %44 {strides = array<i32>} : memref<36x32xf32, #tpu.memory_space<vmem>>, vector<4x14xf32>,
    %c0_72 = arith.constant 0 : index
    %c0_73 = arith.constant 0 : index
    %46 = vector.load %arg1[%c0_72, %c0_73] : memref<4x32xf32, #tpu.memory_space<vmem>>, vector<4x2xf32>
    %c24_74 = arith.constant 24 : index
    %c14_75 = arith.constant 14 : index
    %47 = vector.load %arg5[%c24_74, %c14_75] : memref<36x32xf32, #tpu.memory_space<vmem>>, vector<4x2xf32>
    tpu.vector_store %arg5[%c24_74, %c14_75], %46 {strides = array<i32>} : memref<36x32xf32, #tpu.memory_space<vmem>>, vector<4x2xf32>,
    %c0_76 = arith.constant 0 : index
    %c18_77 = arith.constant 18 : index
    %48 = vector.load %arg1[%c0_76, %c18_77] : memref<4x32xf32, #tpu.memory_space<vmem>>, vector<4x14xf32>
    %c24_78 = arith.constant 24 : index
    %c16_79 = arith.constant 16 : index
    %49 = vector.load %arg5[%c24_78, %c16_79] : memref<36x32xf32, #tpu.memory_space<vmem>>, vector<4x14xf32>
    tpu.vector_store %arg5[%c24_78, %c16_79], %48 {strides = array<i32>} : memref<36x32xf32, #tpu.memory_space<vmem>>, vector<4x14xf32>,
    %c0_80 = arith.constant 0 : index
    %c16_81 = arith.constant 16 : index
    %50 = vector.load %arg1[%c0_80, %c16_81] : memref<4x32xf32, #tpu.memory_space<vmem>>, vector<4x2xf32>
    %c24_82 = arith.constant 24 : index
    %c30_83 = arith.constant 30 : index
    %51 = vector.load %arg5[%c24_82, %c30_83] : memref<36x32xf32, #tpu.memory_space<vmem>>, vector<4x2xf32>
    tpu.vector_store %arg5[%c24_82, %c30_83], %50 {strides = array<i32>} : memref<36x32xf32, #tpu.memory_space<vmem>>, vector<4x2xf32>,
    %c0_84 = arith.constant 0 : index
    %c3_85 = arith.constant 3 : index
    %52 = vector.load %arg1[%c0_84, %c3_85] : memref<4x32xf32, #tpu.memory_space<vmem>>, vector<4x13xf32>
    %c28_86 = arith.constant 28 : index
    %c0_87 = arith.constant 0 : index
    %53 = vector.load %arg5[%c28_86, %c0_87] : memref<36x32xf32, #tpu.memory_space<vmem>>, vector<4x13xf32>
    tpu.vector_store %arg5[%c28_86, %c0_87], %52 {strides = array<i32>} : memref<36x32xf32, #tpu.memory_space<vmem>>, vector<4x13xf32>,
    %c0_88 = arith.constant 0 : index
    %c0_89 = arith.constant 0 : index
    %54 = vector.load %arg1[%c0_88, %c0_89] : memref<4x32xf32, #tpu.memory_space<vmem>>, vector<4x3xf32>
    %c28_90 = arith.constant 28 : index
    %c13_91 = arith.constant 13 : index
    %55 = vector.load %arg5[%c28_90, %c13_91] : memref<36x32xf32, #tpu.memory_space<vmem>>, vector<4x3xf32>
    tpu.vector_store %arg5[%c28_90, %c13_91], %54 {strides = array<i32>} : memref<36x32xf32, #tpu.memory_space<vmem>>, vector<4x3xf32>,
    %c0_92 = arith.constant 0 : index
    %c19_93 = arith.constant 19 : index
    %56 = vector.load %arg1[%c0_92, %c19_93] : memref<4x32xf32, #tpu.memory_space<vmem>>, vector<4x13xf32>
    %c28_94 = arith.constant 28 : index
    %c16_95 = arith.constant 16 : index
    %57 = vector.load %arg5[%c28_94, %c16_95] : memref<36x32xf32, #tpu.memory_space<vmem>>, vector<4x13xf32>
    tpu.vector_store %arg5[%c28_94, %c16_95], %56 {strides = array<i32>} : memref<36x32xf32, #tpu.memory_space<vmem>>, vector<4x13xf32>,
    %c0_96 = arith.constant 0 : index
    %c16_97 = arith.constant 16 : index
    %58 = vector.load %arg1[%c0_96, %c16_97] : memref<4x32xf32, #tpu.memory_space<vmem>>, vector<4x3xf32>
    %c28_98 = arith.constant 28 : index
    %c29_99 = arith.constant 29 : index
    %59 = vector.load %arg5[%c28_98, %c29_99] : memref<36x32xf32, #tpu.memory_space<vmem>>, vector<4x3xf32>
    tpu.vector_store %arg5[%c28_98, %c29_99], %58 {strides = array<i32>} : memref<36x32xf32, #tpu.memory_space<vmem>>, vector<4x3xf32>,
    %c0_100 = arith.constant 0 : index
    %c4_101 = arith.constant 4 : index
    %60 = vector.load %arg1[%c0_100, %c4_101] : memref<4x32xf32, #tpu.memory_space<vmem>>, vector<4x12xf32>
    %c32 = arith.constant 32 : index
    %c0_102 = arith.constant 0 : index
    %61 = vector.load %arg5[%c32, %c0_102] : memref<36x32xf32, #tpu.memory_space<vmem>>, vector<4x12xf32>
    tpu.vector_store %arg5[%c32, %c0_102], %60 {strides = array<i32>} : memref<36x32xf32, #tpu.memory_space<vmem>>, vector<4x12xf32>,
    %c0_103 = arith.constant 0 : index
    %c0_104 = arith.constant 0 : index
    %62 = vector.load %arg1[%c0_103, %c0_104] : memref<4x32xf32, #tpu.memory_space<vmem>>, vector<4x4xf32>
    %c32_105 = arith.constant 32 : index
    %c12_106 = arith.constant 12 : index
    %63 = vector.load %arg5[%c32_105, %c12_106] : memref<36x32xf32, #tpu.memory_space<vmem>>, vector<4x4xf32>
    tpu.vector_store %arg5[%c32_105, %c12_106], %62 {strides = array<i32>} : memref<36x32xf32, #tpu.memory_space<vmem>>, vector<4x4xf32>,
    %c0_107 = arith.constant 0 : index
    %c20_108 = arith.constant 20 : index
    %64 = vector.load %arg1[%c0_107, %c20_108] : memref<4x32xf32, #tpu.memory_space<vmem>>, vector<4x12xf32>
    %c32_109 = arith.constant 32 : index
    %c16_110 = arith.constant 16 : index
    %65 = vector.load %arg5[%c32_109, %c16_110] : memref<36x32xf32, #tpu.memory_space<vmem>>, vector<4x12xf32>
    tpu.vector_store %arg5[%c32_109, %c16_110], %64 {strides = array<i32>} : memref<36x32xf32, #tpu.memory_space<vmem>>, vector<4x12xf32>,
    %c0_111 = arith.constant 0 : index
    %c16_112 = arith.constant 16 : index
    %66 = vector.load %arg1[%c0_111, %c16_112] : memref<4x32xf32, #tpu.memory_space<vmem>>, vector<4x4xf32>
    %c32_113 = arith.constant 32 : index
    %c28_114 = arith.constant 28 : index
    %67 = vector.load %arg5[%c32_113, %c28_114] : memref<36x32xf32, #tpu.memory_space<vmem>>, vector<4x4xf32>
    tpu.vector_store %arg5[%c32_113, %c28_114], %66 {strides = array<i32>} : memref<36x32xf32, #tpu.memory_space<vmem>>, vector<4x4xf32>,
    %c0_115 = arith.constant 0 : index
    %c0_116 = arith.constant 0 : index
    %68 = vector.load %arg2[%c0_115, %c0_116] : memref<4x36xf32, #tpu.memory_space<vmem>>, vector<4x36xf32>
    %c0_117 = arith.constant 0 : index
    %c0_118 = arith.constant 0 : index
    %69 = vector.load %arg5[%c0_117, %c0_118] : memref<36x32xf32, #tpu.memory_space<vmem>>, vector<36x32xf32>
    %cst = arith.constant dense<0.000000e+00> : vector<4x32xf32>
    %70 = tpu.matmul %68, %69, %cst {dimension_numbers = #tpu.dot_dimension_numbers<[1], [0], [0], [1], [0, 0, 1, 1], [], []>} : vector<4x36xf32>, vector<36x32xf32>, vector<4x32xf32> -> vector<4x32xf32>
    %c0_119 = arith.constant 0 : index
    %c0_120 = arith.constant 0 : index
    %71 = vector.load %arg3[%c0_119, %c0_120] : memref<4x1xf32, #tpu.memory_space<vmem>>, vector<4x1xf32>
    %72 = vector.broadcast %71 : vector<4x1xf32> to vector<4x32xf32>
    %73 = arith.addf %70, %72 : vector<4x32xf32>
    %c0_121 = arith.constant 0 : index
    %c0_122 = arith.constant 0 : index
    %74 = vector.load %arg4[%c0_121, %c0_122] : memref<4x32xf32, #tpu.memory_space<vmem>>, vector<4x32xf32>
    tpu.vector_store %arg4[%c0_121, %c0_122], %73 {strides = array<i32>} : memref<4x32xf32, #tpu.memory_space<vmem>>, vector<4x32xf32>,
    return
  }
  func.func @transform_0(%arg0: i32) -> (i32, i32) {
    %c0_i32 = arith.constant 0 : i32
    %c0_i32_0 = arith.constant 0 : i32
    %c0_i32_1 = arith.constant 0 : i32
    return %c0_i32, %c0_i32_0 : i32, i32
  }
  func.func @transform_1(%arg0: i32) -> (i32, i32) {
    %c0_i32 = arith.constant 0 : i32
    %c0_i32_0 = arith.constant 0 : i32
    %c0_i32_1 = arith.constant 0 : i32
    return %c0_i32, %c0_i32_0 : i32, i32
  }
  func.func @transform_2(%arg0: i32) -> (i32, i32) {
    %c0_i32 = arith.constant 0 : i32
    %c0_i32_0 = arith.constant 0 : i32
    %c0_i32_1 = arith.constant 0 : i32
    return %c0_i32, %c0_i32_0 : i32, i32
  }
  func.func @transform_3(%arg0: i32) -> (i32, i32) {
    %c0_i32 = arith.constant 0 : i32
    %c0_i32_0 = arith.constant 0 : i32
    %c0_i32_1 = arith.constant 0 : i32
    return %c0_i32, %c0_i32_0 : i32, i32
  }
}

</mosaic_0001>

<llo_original>
// kernel: tpu_custom_call.1
$region0: #{tpu_custom_call.1}
  #allocation0 [shape = 'u32[]', space=smem, size = 0x4, offset = 0x4, fixed_abs, tag = 'smem constant byte address 0x4 - core index']
  #allocation1 [shape = 'u32[144,128]{1,0:T(1,128)}', space=vmem, size = 0x12000, scoped, tag = 'internal scratch']
  #allocation2 [shape = 'f32[36,32]{1,0:T(8,128)}', space=vmem, size = 0x5000, scoped, tag = 'scratch operand']
  %s0 = inlined_call_operand.vmem [shape: f32[4,32], index: 0, kind: input, shape index: {}]
  %s1 = inlined_call_operand.hbm [shape: f32[4,36], index: 1, kind: input, shape index: {}]
  %s2 = inlined_call_operand.vmem [shape: f32[4,1], index: 2, kind: input, shape index: {}]
  %s3 = inlined_call_operand.hbm [shape: f32[4,32], index: 3, kind: output, shape index: {}]
  %s4 = sld [smem:[#allocation0]]
  $region26: #{tpu_custom_call.1} parent=0
    _
  %s6 = ssub.s32 1, %s4
  %s7 = scalar_select 0, %s6, %s4
  $region1: #{tpu_custom_call.1} parent=0
    #allocation3 [shape = 'u8[2048]{0}', space=vmem, size = 0x800, scoped, tag = 'input window, operand 1, single buffered']
    #allocation4 [shape = 's32[1]{0}', space=sflag, size = 0x4, scoped, tag = 'scoped memory for tpu_custom_call.1']
    #allocation5 [shape = 's32[1]{0}', space=sflag, size = 0x4, scoped, tag = 'scoped memory for tpu_custom_call.1']
    #allocation6 [shape = 'u8[2048]{0}', space=vmem, size = 0x800, scoped, tag = 'output window, operand 0, single buffered']
    %8 = vsyncpa [#allocation4], 0
    %9 = vsyncpa [#allocation5], 0
    // Predicated region
    $region2: #{tpu_custom_call.1} parent=1 // pred_check
      _
    $region3: #{tpu_custom_call.1} parent=1 // pred_check_branch
      %11 = sbr.rel (0) target = $region5
    $region4: #{tpu_custom_call.1} parent=1 // pred_region
      _
    $region5: #{tpu_custom_call.1} parent=1 // pred_fallthru
      _
    // Predicated region
    $region6: #{tpu_custom_call.1} parent=1 // pred_check
      _
    $region7: #{tpu_custom_call.1} parent=1 // pred_check_branch
      %13 = sbr.rel (0) target = $region9
    $region8: #{tpu_custom_call.1} parent=1 // pred_region
      %s15 = ssub.s32 64, 64
      %16 = vsyncadd [#allocation4], %s15
      %s18 = sshll.u32 [#allocation3], 4
      %s19 = int_to_ptr.vmem [resolvable:$true] %s18
      %21 = dma.hbm_to_vmem [thread:$0]  %s1, 64, %s19, [#allocation4]
    $region9: #{tpu_custom_call.1} parent=1 // pred_fallthru
      _
    // Predicated region
    $region10: #{tpu_custom_call.1} parent=1 // pred_check
      _
    $region11: #{tpu_custom_call.1} parent=1 // pred_check_branch
      %23 = sbr.rel (0) target = $region13
    $region12: #{tpu_custom_call.1} parent=1 // pred_region
      _
    $region13: #{tpu_custom_call.1} parent=1 // pred_fallthru
      _
    // Predicated region
    $region14: #{tpu_custom_call.1} parent=1 // pred_check
      _
    $region15: #{tpu_custom_call.1} parent=1 // pred_check_branch
      %25 = sbr.rel (0) target = $region17
    $region16: #{tpu_custom_call.1} parent=1 // pred_region
      %26 = dma.done [#allocation4], 64
    $region17: #{tpu_custom_call.1} parent=1 // pred_fallthru
      _
    %v27 = vld [vmem:[%s0] sm:$0xf]
    %29 = vrot.lane.b32.xlu0 %v27, 116
    %v30 = vpop.permute.xlu0 %29
    %vm32 = vcmask 27648
    %33 = vst.msk [vmem:[#allocation2] sm:$0xf] %vm32, %v30
    %v34 = vld [vmem:[%s0] sm:$0xf]
    %36 = vrot.lane.b32.xlu0 %v34, 4
    %v37 = vpop.permute.xlu0 %36
    %vm39 = vcmask 125984
    %40 = vst.msk [vmem:[#allocation2] sm:$0xf] %vm39, %v37
    %v41 = vld [vmem:[%s0] sm:$0xf]
    %43 = vrot.lane.b32.xlu0 %v41, 116
    %v44 = vpop.permute.xlu0 %43
    %vm46 = vcmask 158848
    %47 = vst.msk [vmem:[#allocation2] sm:$0xf] %vm46, %v44
    %v48 = vld [vmem:[%s0] sm:$0xf]
    %50 = vrot.lane.b32.xlu0 %v48, 4
    %v51 = vpop.permute.xlu0 %50
    %vm53 = vcmask 257184
    %54 = vst.msk [vmem:[#allocation2] sm:$0xf] %vm53, %v51
    %v55 = vld [vmem:[%s0] sm:$0xf]
    %57 = vrot.lane.b32.xlu0 %v55, 115
    %v58 = vpop.permute.xlu0 %57
    %vm60 = vcmask 19456
    %61 = vst.msk [vmem:[#allocation2 + $0x4] sm:$0xf] %vm60, %v58
    %v62 = vld [vmem:[%s0] sm:$0xf]
    %64 = vrot.lane.b32.xlu0 %v62, 3
    %v65 = vpop.permute.xlu0 %64
    %vm67 = vcmask 125976
    %68 = vst.msk [vmem:[#allocation2 + $0x4] sm:$0xf] %vm67, %v65
    %v69 = vld [vmem:[%s0] sm:$0xf]
    %71 = vrot.lane.b32.xlu0 %v69, 115
    %v72 = vpop.permute.xlu0 %71
    %vm74 = vcmask 150656
    %75 = vst.msk [vmem:[#allocation2 + $0x4] sm:$0xf] %vm74, %v72
    %v76 = vld [vmem:[%s0] sm:$0xf]
    %78 = vrot.lane.b32.xlu0 %v76, 3
    %v79 = vpop.permute.xlu0 %78
    %vm81 = vcmask 257176
    %82 = vst.msk [vmem:[#allocation2 + $0x4] sm:$0xf] %vm81, %v79
    %v83 = vld [vmem:[%s0] sm:$0xf]
    %85 = vrot.lane.b32.xlu0 %v83, 114
    %v86 = vpop.permute.xlu0 %85
    %vm88 = vcmask 11264
    %89 = vst.msk [vmem:[#allocation2 + $0x8] sm:$0xf] %vm88, %v86
    %v90 = vld [vmem:[%s0] sm:$0xf]
    %92 = vrot.lane.b32.xlu0 %v90, 2
    %v93 = vpop.permute.xlu0 %92
    %vm95 = vcmask 125968
    %96 = vst.msk [vmem:[#allocation2 + $0x8] sm:$0xf] %vm95, %v93
    %v97 = vld [vmem:[%s0] sm:$0xf]
    %99 = vrot.lane.b32.xlu0 %v97, 114
    %v100 = vpop.permute.xlu0 %99
    %vm102 = vcmask 142464
    %103 = vst.msk [vmem:[#allocation2 + $0x8] sm:$0xf] %vm102, %v100
    %v104 = vld [vmem:[%s0] sm:$0xf]
    %106 = vrot.lane.b32.xlu0 %v104, 2
    %v107 = vpop.permute.xlu0 %106
    %vm109 = vcmask 257168
    %110 = vst.msk [vmem:[#allocation2 + $0x8] sm:$0xf] %vm109, %v107
    %v111 = vld [vmem:[%s0] sm:$0xf]
    %113 = vrot.lane.b32.xlu0 %v111, 113
    %v114 = vpop.permute.xlu0 %113
    %vm116 = vcmask 3072
    %117 = vst.msk [vmem:[#allocation2 + $0xc] sm:$0xf] %vm116, %v114
    %v118 = vld [vmem:[%s0] sm:$0xf]
    %120 = vrot.lane.b32.xlu0 %v118, 1
    %v121 = vpop.permute.xlu0 %120
    %vm123 = vcmask 125960
    %124 = vst.msk [vmem:[#allocation2 + $0xc] sm:$0xf] %vm123, %v121
    %v125 = vld [vmem:[%s0] sm:$0xf]
    %127 = vrot.lane.b32.xlu0 %v125, 113
    %v128 = vpop.permute.xlu0 %127
    %vm130 = vcmask 134272
    %131 = vst.msk [vmem:[#allocation2 + $0xc] sm:$0xf] %vm130, %v128
    %v132 = vld [vmem:[%s0] sm:$0xf]
    %134 = vrot.lane.b32.xlu0 %v132, 1
    %v135 = vpop.permute.xlu0 %134
    %vm137 = vcmask 257160
    %138 = vst.msk [vmem:[#allocation2 + $0xc] sm:$0xf] %vm137, %v135
    %v139 = vld [vmem:[%s0] sm:$0xf]
    %vm140 = vcmask 125952
    %141 = vst.msk [vmem:[#allocation2 + $0x10] sm:$0xf] %vm140, %v139
    %v142 = vld [vmem:[%s0] sm:$0xf]
    %vm143 = vcmask 257152
    %144 = vst.msk [vmem:[#allocation2 + $0x10] sm:$0xf] %vm143, %v142
    %v145 = vld [vmem:[%s0] sm:$0xf]
    %147 = vrot.lane.b32.xlu0 %v145, 127
    %v148 = vpop.permute.xlu0 %147
    %vm150 = vcmask 117760
    %151 = vst.msk [vmem:[#allocation2 + $0x14] sm:$0xf] %vm150, %v148
    %v152 = vld [vmem:[%s0] sm:$0xf]
    %154 = vrot.lane.b32.xlu0 %v152, 15
    %v155 = vpop.permute.xlu0 %154
    %vm157 = vcmask 126072
    %158 = vst.msk [vmem:[#allocation2 + $0x14] sm:$0xf] %vm157, %v155
    %v159 = vld [vmem:[%s0] sm:$0xf]
    %161 = vrot.lane.b32.xlu0 %v159, 127
    %v162 = vpop.permute.xlu0 %161
    %vm164 = vcmask 248960
    %165 = vst.msk [vmem:[#allocation2 + $0x14] sm:$0xf] %vm164, %v162
    %v166 = vld [vmem:[%s0] sm:$0xf]
    %168 = vrot.lane.b32.xlu0 %v166, 15
    %v169 = vpop.permute.xlu0 %168
    %vm171 = vcmask 257272
    %172 = vst.msk [vmem:[#allocation2 + $0x14] sm:$0xf] %vm171, %v169
    %v173 = vld [vmem:[%s0] sm:$0xf]
    %175 = vrot.lane.b32.xlu0 %v173, 126
    %v176 = vpop.permute.xlu0 %175
    %vm178 = vcmask 109568
    %179 = vst.msk [vmem:[#allocation2 + $0x18] sm:$0xf] %vm178, %v176
    %v180 = vld [vmem:[%s0] sm:$0xf]
    %182 = vrot.lane.b32.xlu0 %v180, 14
    %v183 = vpop.permute.xlu0 %182
    %vm185 = vcmask 126064
    %186 = vst.msk [vmem:[#allocation2 + $0x18] sm:$0xf] %vm185, %v183
    %v187 = vld [vmem:[%s0] sm:$0xf]
    %189 = vrot.lane.b32.xlu0 %v187, 126
    %v190 = vpop.permute.xlu0 %189
    %vm192 = vcmask 240768
    %193 = vst.msk [vmem:[#allocation2 + $0x18] sm:$0xf] %vm192, %v190
    %v194 = vld [vmem:[%s0] sm:$0xf]
    %196 = vrot.lane.b32.xlu0 %v194, 14
    %v197 = vpop.permute.xlu0 %196
    %vm199 = vcmask 257264
    %200 = vst.msk [vmem:[#allocation2 + $0x18] sm:$0xf] %vm199, %v197
    %v201 = vld [vmem:[%s0] sm:$0xf]
    %203 = vrot.lane.b32.xlu0 %v201, 125
    %v204 = vpop.permute.xlu0 %203
    %vm206 = vcmask 101376
    %207 = vst.msk [vmem:[#allocation2 + $0x1c] sm:$0xf] %vm206, %v204
    %v208 = vld [vmem:[%s0] sm:$0xf]
    %210 = vrot.lane.b32.xlu0 %v208, 13
    %v211 = vpop.permute.xlu0 %210
    %vm213 = vcmask 126056
    %214 = vst.msk [vmem:[#allocation2 + $0x1c] sm:$0xf] %vm213, %v211
    %v215 = vld [vmem:[%s0] sm:$0xf]
    %217 = vrot.lane.b32.xlu0 %v215, 125
    %v218 = vpop.permute.xlu0 %217
    %vm220 = vcmask 232576
    %221 = vst.msk [vmem:[#allocation2 + $0x1c] sm:$0xf] %vm220, %v218
    %v222 = vld [vmem:[%s0] sm:$0xf]
    %224 = vrot.lane.b32.xlu0 %v222, 13
    %v225 = vpop.permute.xlu0 %224
    %vm227 = vcmask 257256
    %228 = vst.msk [vmem:[#allocation2 + $0x1c] sm:$0xf] %vm227, %v225
    %v229 = vld [vmem:[%s0] sm:$0xf]
    %231 = vrot.lane.b32.xlu0 %v229, 124
    %v232 = vpop.permute.xlu0 %231
    %vm234 = vcmask 93184
    %235 = vst.msk [vmem:[#allocation2 + $0x20] sm:$0xf] %vm234, %v232
    %v236 = vld [vmem:[%s0] sm:$0xf]
    %238 = vrot.lane.b32.xlu0 %v236, 12
    %v239 = vpop.permute.xlu0 %238
    %vm241 = vcmask 126048
    %242 = vst.msk [vmem:[#allocation2 + $0x20] sm:$0xf] %vm241, %v239
    %v243 = vld [vmem:[%s0] sm:$0xf]
    %245 = vrot.lane.b32.xlu0 %v243, 124
    %v246 = vpop.permute.xlu0 %245
    %vm248 = vcmask 224384
    %249 = vst.msk [vmem:[#allocation2 + $0x20] sm:$0xf] %vm248, %v246
    %v250 = vld [vmem:[%s0] sm:$0xf]
    %252 = vrot.lane.b32.xlu0 %v250, 12
    %v253 = vpop.permute.xlu0 %252
    %vm255 = vcmask 257248
    %256 = vst.msk [vmem:[#allocation2 + $0x20] sm:$0xf] %vm255, %v253
    %v257 = vld [vmem:[#allocation3] sm:$0xf]
    %v258 = vld [vmem:[#allocation2] sm:$0xff]
    %v259 = vld [vmem:[#allocation2 + $0x8] sm:$0xff]
    %v260 = vld [vmem:[#allocation2 + $0x10] sm:$0xff]
    %v261 = vld [vmem:[#allocation2 + $0x18] sm:$0xff]
    %v262 = vld [vmem:[#allocation2 + $0x20] sm:$0xf]
    %v263 = vld [vmem:[%s2] sm:$0xf]
    %265 = vset.pattern.permute.xlu0 0
    %266 = vperm.xlu0 %265, %v263
    %v267 = vpop.permute.xlu0 %266
    %vm269 = vcmask 293888
    %v271 = vsel %vm269, %v257, 0
    %vm273 = vcmask 1043456
    %v275 = vsel %vm273, %v262, 0
    %277 = vmatprep.subr.mxu0 0.0
    %278 = vmatpush1.msra.mxu0 0.0
    %279 = vmatprep.subr.mxu0 0.0
    %280 = vmatpush1.msra.mxu0 0.0
    %281 = vmatprep.subr.mxu0 0.0
    %282 = vmatpush1.msra.mxu0 0.0
    %283 = vmatprep.subr.mxu0 0.0
    %284 = vmatpush1.msra.mxu0 0.0
    %285 = vmatprep.subr.mxu0 0.0
    %286 = vmatpush1.msra.mxu0 0.0
    %287 = vmatprep.subr.mxu0 0.0
    %288 = vmatpush1.msra.mxu0 0.0
    %289 = vmatprep.subr.mxu0 0.0
    %290 = vmatpush1.msra.mxu0 0.0
    %291 = vmatprep.subr.mxu0 0.0
    %292 = vmatpush1.msra.mxu0 0.0
    %293 = vmatprep.subr.mxu0 0.0
    %294 = vmatpush1.msra.mxu0 0.0
    %295 = vmatprep.subr.mxu0 0.0
    %296 = vmatpush1.msra.mxu0 0.0
    %297 = vmatprep.subr.mxu0 0.0
    %298 = vmatpush1.msra.mxu0 0.0
    %299 = vmatprep.subr.mxu0 0.0
    %300 = vmatpush1.msra.mxu0 %v275
    %301 = vmatprep.subr.mxu0 0.0
    %302 = vmatpush1.msra.mxu0 %v261
    %303 = vmatprep.subr.mxu0 0.0
    %304 = vmatpush1.msra.mxu0 %v260
    %305 = vmatprep.subr.mxu0 0.0
    %306 = vmatpush1.msra.mxu0 %v259
    %307 = vmatprep.subr.mxu0 0.0
    %308 = vmatpush1.msra.mxu0 %v258
    %309 = vmatprep.subr.mxu0 0.0
    %310 = vmatpush2.msra.mxu0 0.0
    %311 = vmatprep.subr.mxu0 0.0
    %312 = vmatpush2.msra.mxu0 0.0
    %313 = vmatprep.subr.mxu0 0.0
    %314 = vmatpush2.msra.mxu0 0.0
    %315 = vmatprep.subr.mxu0 0.0
    %316 = vmatpush2.msra.mxu0 0.0
    %317 = vmatprep.subr.mxu0 0.0
    %318 = vmatpush2.msra.mxu0 0.0
    %319 = vmatprep.subr.mxu0 0.0
    %320 = vmatpush2.msra.mxu0 0.0
    %321 = vmatprep.subr.mxu0 0.0
    %322 = vmatpush2.msra.mxu0 0.0
    %323 = vmatprep.subr.mxu0 0.0
    %324 = vmatpush2.msra.mxu0 0.0
    %325 = vmatprep.subr.mxu0 0.0
    %326 = vmatpush2.msra.mxu0 0.0
    %327 = vmatprep.subr.mxu0 0.0
    %328 = vmatpush2.msra.mxu0 0.0
    %329 = vmatprep.subr.mxu0 0.0
    %330 = vmatpush2.msra.mxu0 0.0
    %331 = vmatprep.subr.mxu0 0.0
    %332 = vmatpush2.msra.mxu0 0.0
    %333 = vmatprep.subr.mxu0 0.0
    %334 = vmatpush2.msra.mxu0 0.0
    %335 = vmatprep.subr.mxu0 0.0
    %336 = vmatpush2.msra.mxu0 0.0
    %337 = vmatprep.subr.mxu0 0.0
    %338 = vmatpush2.msra.mxu0 0.0
    %339 = vmatprep.subr.mxu0 0.0
    %340 = vmatpush2.msra.mxu0 0.0
    %341 = vmatprep.mubr.f32.mxu0 0.0
    %342 = vmatmul.mubr.f32.gmra.mxu0 %v271
    %v343 = vpop.f32.mrf.mxu0
    %v344 = vadd.f32 %v267, %v343
    %v345 = vpop.f32.mrf.mxu0
    %346 = vdwg.mxu0
    %vm347 = vcmask 257024
    %348 = vst.msk [vmem:[#allocation6] sm:$0xf] %vm347, %v344
    // Predicated region
    $region18: #{tpu_custom_call.1} parent=1 // pred_check
      _
    $region19: #{tpu_custom_call.1} parent=1 // pred_check_branch
      %350 = sbr.rel (0) target = $region21
    $region20: #{tpu_custom_call.1} parent=1 // pred_region
      %s352 = ssub.s32 64, 64
      %353 = vsyncadd [#allocation5], %s352
      %s355 = sshll.u32 [#allocation6], 4
      %s356 = int_to_ptr.vmem [resolvable:$true] %s355
      %358 = dma.vmem_to_hbm [thread:$0]  %s356, 64, %s3, [#allocation5]
    $region21: #{tpu_custom_call.1} parent=1 // pred_fallthru
      _
    // Predicated region
    $region22: #{tpu_custom_call.1} parent=1 // pred_check
      _
    $region23: #{tpu_custom_call.1} parent=1 // pred_check_branch
      %360 = sbr.rel (0) target = $region25
    $region24: #{tpu_custom_call.1} parent=1 // pred_region
      %361 = dma.done [#allocation5], 64
    $region25: #{tpu_custom_call.1} parent=1 // pred_fallthru
      _
    %362 = vsyncpa [#allocation4], 1
    %363 = vsyncpa [#allocation5], 1

</llo_original>
